<compile_context>
chip_gen: v7x
topology: tpu7x:2x2x1
jax: 0.10.0
libtpu: 0.0.40
codegen_flags: <defaults>
</compile_context>

<pallas_src>
import functools

import jax
import jax.numpy as jnp
from jax import lax
from jax.experimental import pallas as pl
from jax.experimental.pallas import tpu as pltpu

# ---- module configuration (mirrors the PyTorch globals / ctor args) --------
NUMMOTIF = 16       # nummotif
MOTIFLEN = 24       # motiflen
IN_CHANNELS = 4     # self.input_channels (embedding=False)
HIDDEN_SIZE = 32    # hidden_size
HIDDEN = True       # self.hidden -> use the hidden FC layer
SIGMA_CONV = 0.1
SIGMA_NEU = 0.1
# RNN=False, conv=True, embedding=False, conv_layers=1 (single conv stage)
# dropprob is irrelevant at inference (dropout == identity).


def network_kernel(x_ref, wflat_ref, bconv_ref, whidT_ref, bhid_ref,
                   wneuT_ref, bneu_ref, out_ref, *, cpad, lout):
    """One batch block: x_ref is (L*cpad, B); out_ref is (1, B) lane-dense."""
    wflat = wflat_ref[...]                 # (M, K*cpad) flattened conv weight
    bconv = bconv_ref[...]                 # (M, 1) conv bias
    M, KC = wflat.shape
    B = x_ref.shape[1]

    def tap(l, feat):
        # Aligned dynamic window: rows [l*cpad, l*cpad + K*cpad) of the (pos, chan)
        # layout are exactly the im2col column for output position l.
        start = pl.multiple_of(l * cpad, cpad)
        xs = x_ref[pl.ds(start, KC), :]                                  # (K*cpad, B)
        y = jnp.dot(wflat, xs, preferred_element_type=jnp.float32) + bconv  # (M, B)
        # relu is absorbed: feat starts at 0, so max(feat, y) == max(feat, relu(y)).
        return jnp.maximum(feat, y)

    # relu -> MaxPool1d(3,1) -> max over length  ==  running max over all Lout
    # positions of the biased conv output (Lout >= 3 asserted in the wrapper).
    feat = lax.fori_loop(0, lout, tap, jnp.zeros((M, B), jnp.float32))   # (M, B)
    # TODO(synk): dropout is stochastic in train mode; inference => identity.

    # hidden FC, batched over the lane axis: (H, M) @ (M, B)
    h = jnp.dot(whidT_ref[...], feat,
                preferred_element_type=jnp.float32) + bhid_ref[...]      # (H, B)
    h = jnp.maximum(h, 0.0)

    # output FC + sigmoid: (1, H) @ (H, B) -> lane-dense (1, B) store
    logit = jnp.dot(wneuT_ref[...], h,
                    preferred_element_type=jnp.float32) + bneu_ref[...]  # (1, B)
    out_ref[...] = jax.nn.sigmoid(logit)


def network_forward(x, params, *, block_b=128):
    """x: (N, C_in, L) float32 -> (N, 1) float32 (sigmoid probabilities)."""
    wconv, bconv, whid, bhid, wneu, bneu = params
    N, cin, L = x.shape
    M, _, K = wconv.shape
    H = whid.shape[1]
    lout = L - K + 1
    assert lout >= 3, "sequence too short for conv + maxpool(3)"
    assert block_b % 128 == 0, "batch block must be lane-dense (multiple of 128)"
    # NOTE: block_b sizes the per-step VMEM tile (2 * L*cpad * block_b * 4 bytes when
    # double-buffered).  On v7x (64 MiB VMEM) keep it a few MiB; >=2 grid steps lets
    # both v7x TensorCores work via dimension_semantics=("parallel",).

    cpad = ((cin + 7) // 8) * 8                       # pad channels to sublane width
    npad = max(block_b, ((N + block_b - 1) // block_b) * block_b)

    # Wrapper-side layout plumbing (pure JAX, cheap):
    #   x2[(l*cpad + c), n] = x[n, c, l]   -> batch on the lane axis
    xp = jnp.pad(x.astype(jnp.float32),
                 ((0, npad - N), (0, cpad - cin), (0, 0)))
    x2 = jnp.transpose(xp, (2, 1, 0)).reshape(L * cpad, npad)

    #   wflat[m, k*cpad + c] = wconv[m, c, k]  (zero rows for the padded channels)
    wflat = jnp.pad(wconv.astype(jnp.float32), ((0, 0), (0, cpad - cin), (0, 0)))
    wflat = jnp.transpose(wflat, (0, 2, 1)).reshape(M, K * cpad)

    bconv2 = bconv.reshape(M, 1).astype(jnp.float32)
    whidT = whid.T.astype(jnp.float32)                # (H, M)
    bhid2 = bhid.reshape(H, 1).astype(jnp.float32)
    wneuT = wneu.T.astype(jnp.float32)                # (1, H)
    bneu2 = bneu.reshape(1, 1).astype(jnp.float32)

    kernel = functools.partial(network_kernel, cpad=cpad, lout=lout)
    out = pl.pallas_call(
        kernel,
        out_shape=jax.ShapeDtypeStruct((1, npad), jnp.float32),
        grid_spec=pltpu.PrefetchScalarGridSpec(
            num_scalar_prefetch=0,
            grid=(npad // block_b,),
            in_specs=[
                pl.BlockSpec((L * cpad, block_b), lambda n: (0, n)),  # batch block of x
                pl.BlockSpec((M, K * cpad), lambda n: (0, 0)),        # flattened conv W
                pl.BlockSpec((M, 1), lambda n: (0, 0)),               # conv bias
                pl.BlockSpec((H, M), lambda n: (0, 0)),               # wHidden^T
                pl.BlockSpec((H, 1), lambda n: (0, 0)),               # wHiddenBias
                pl.BlockSpec((1, H), lambda n: (0, 0)),               # wNeu^T
                pl.BlockSpec((1, 1), lambda n: (0, 0)),               # wNeuBias
            ],
            out_specs=pl.BlockSpec((1, block_b), lambda n: (0, n)),   # lane-dense out
        ),
        compiler_params=pltpu.CompilerParams(
            dimension_semantics=("parallel",)),
    )(x2, wflat, bconv2, whidT, bhid2, wneuT, bneu2)
    return out[0, :N].reshape(N, 1)


def network_reference(x, params):
    """Pure-JAX reference of Network.forward (inference)."""
    wconv, bconv, whid, bhid, wneu, bneu = params
    y = lax.conv_general_dilated(
        x, wconv, window_strides=(1,), padding="VALID",
        dimension_numbers=("NCH", "OIH", "NCH"))
    y = y + bconv[None, :, None]
    y = jnp.maximum(y, 0.0)
    Lp = y.shape[2]
    y = jnp.maximum(jnp.maximum(y[:, :, 0:Lp - 2], y[:, :, 1:Lp - 1]),
                    y[:, :, 2:Lp])
    feat = jnp.max(y, axis=2)
    h = jnp.maximum(feat @ whid + bhid, 0.0)
    return jax.nn.sigmoid(h @ wneu + bneu)


if __name__ == "__main__":
    key = jax.random.PRNGKey(0)
    kx, k0, k1, k2, k3, k4, k5 = jax.random.split(key, 7)

    # Small but batched: 2 grid steps of 128 examples each (L=64 sequences).
    N, L = 256, 64
    x = jax.random.normal(kx, (N, IN_CHANNELS, L), dtype=jnp.float32)

    # deterministic parameter init mirroring Network.__init__
    # (xavier_init=False path: normal inits with the given sigmas)
    wconv = SIGMA_CONV * jax.random.normal(k0, (NUMMOTIF, IN_CHANNELS, MOTIFLEN),
                                           dtype=jnp.float32)
    bconv = jax.random.normal(k1, (NUMMOTIF,), dtype=jnp.float32)        # std=1
    whid = SIGMA_NEU * jax.random.normal(k2, (NUMMOTIF, HIDDEN_SIZE),
                                         dtype=jnp.float32)
    bhid = SIGMA_NEU * jax.random.normal(k3, (HIDDEN_SIZE,), dtype=jnp.float32)
    wneu = SIGMA_NEU * jax.random.normal(k4, (HIDDEN_SIZE, 1), dtype=jnp.float32)
    bneu = SIGMA_NEU * jax.random.normal(k5, (1,), dtype=jnp.float32)
    params = (wconv, bconv, whid, bhid, wneu, bneu)

    out = network_forward(x, params, block_b=128)
    out = jax.block_until_ready(out)

    ref = network_reference(x, params)
    assert out.shape == (N, 1)
    assert jnp.allclose(out, ref, rtol=1e-3, atol=1e-5), (out, ref)

    print("KERNEL_OK")
</pallas_src>

<mosaic_0001>
module attributes {stable_mosaic.version = 11 : i64} {
  func.func @network_kernel(%arg0: i32, %arg1: memref<512x128xf32, #tpu.memory_space<vmem>>, %arg2: memref<16x192xf32, #tpu.memory_space<vmem>>, %arg3: memref<16x1xf32, #tpu.memory_space<vmem>>, %arg4: memref<32x16xf32, #tpu.memory_space<vmem>>, %arg5: memref<32x1xf32, #tpu.memory_space<vmem>>, %arg6: memref<1x32xf32, #tpu.memory_space<vmem>>, %arg7: memref<1x1xf32, #tpu.memory_space<vmem>>, %arg8: memref<1x128xf32, #tpu.memory_space<vmem>>) attributes {dimension_semantics = [#tpu.dimension_semantics<parallel>], iteration_bounds = array<i64: 2>, scalar_prefetch = 0 : i64, scratch_operands = 0 : i64, tpu.core_type = #tpu.core_type<tc>, window_params = [{transform_indices = @transform_0, window_bounds = array<i64: 512, 128>}, {pipeline_mode = #tpu.pipeline_mode<synchronous>, transform_indices = @transform_1, window_bounds = array<i64: 16, 192>}, {pipeline_mode = #tpu.pipeline_mode<synchronous>, transform_indices = @transform_2, window_bounds = array<i64: 16, 1>}, {pipeline_mode = #tpu.pipeline_mode<synchronous>, transform_indices = @transform_3, window_bounds = array<i64: 32, 16>}, {pipeline_mode = #tpu.pipeline_mode<synchronous>, transform_indices = @transform_4, window_bounds = array<i64: 32, 1>}, {pipeline_mode = #tpu.pipeline_mode<synchronous>, transform_indices = @transform_5, window_bounds = array<i64: 1, 32>}, {pipeline_mode = #tpu.pipeline_mode<synchronous>, transform_indices = @transform_6, window_bounds = array<i64: 1, 1>}, {transform_indices = @transform_7, window_bounds = array<i64: 1, 128>}]} {
    %c0 = arith.constant 0 : index
    %c0_0 = arith.constant 0 : index
    %0 = vector.load %arg2[%c0, %c0_0] : memref<16x192xf32, #tpu.memory_space<vmem>>, vector<16x192xf32>
    %c0_1 = arith.constant 0 : index
    %c0_2 = arith.constant 0 : index
    %1 = vector.load %arg3[%c0_1, %c0_2] : memref<16x1xf32, #tpu.memory_space<vmem>>, vector<16x1xf32>
    %cst = arith.constant 0.000000e+00 : f32
    %2 = vector.broadcast %cst : f32 to vector<16x128xf32>
    %c0_i32 = arith.constant 0 : i32
    %c41_i32 = arith.constant 41 : i32
    %3 = arith.addi %c0_i32, %c41_i32 : i32
    %c1_i32 = arith.constant 1 : i32
    %4 = scf.for %arg9 = %c0_i32 to %3 step %c1_i32 iter_args(%arg10 = %2) -> (vector<16x128xf32>)  : i32 {
      %c8_i32 = arith.constant 8 : i32
      %23 = arith.muli %arg9, %c8_i32 : i32
      %24 = tpu.assume_multiple %23, 8 : i32
      %25 = arith.index_cast %24 : i32 to index
      %c0_18 = arith.constant 0 : index
      %26 = vector.load %arg1[%25, %c0_18] : memref<512x128xf32, #tpu.memory_space<vmem>>, vector<192x128xf32>
      %cst_19 = arith.constant dense<0.000000e+00> : vector<16x128xf32>
      %27 = tpu.matmul %0, %26, %cst_19 {dimension_numbers = #tpu.dot_dimension_numbers<[1], [0], [0], [1], [0, 0, 1, 1], [], []>} : vector<16x192xf32>, vector<192x128xf32>, vector<16x128xf32> -> vector<16x128xf32>
      %28 = vector.broadcast %1 : vector<16x1xf32> to vector<16x128xf32>
      %29 = arith.addf %27, %28 : vector<16x128xf32>
      %30 = arith.maximumf %arg10, %29 : vector<16x128xf32>
      scf.yield %30 : vector<16x128xf32>
    }
    %c41_i32_3 = arith.constant 41 : i32
    %c0_4 = arith.constant 0 : index
    %c0_5 = arith.constant 0 : index
    %5 = vector.load %arg4[%c0_4, %c0_5] : memref<32x16xf32, #tpu.memory_space<vmem>>, vector<32x16xf32>
    %cst_6 = arith.constant dense<0.000000e+00> : vector<32x128xf32>
    %6 = tpu.matmul %5, %4, %cst_6 {dimension_numbers = #tpu.dot_dimension_numbers<[1], [0], [0], [1], [0, 0, 1, 1], [], []>} : vector<32x16xf32>, vector<16x128xf32>, vector<32x128xf32> -> vector<32x128xf32>
    %c0_7 = arith.constant 0 : index
    %c0_8 = arith.constant 0 : index
    %7 = vector.load %arg5[%c0_7, %c0_8] : memref<32x1xf32, #tpu.memory_space<vmem>>, vector<32x1xf32>
    %8 = vector.broadcast %7 : vector<32x1xf32> to vector<32x128xf32>
    %9 = arith.addf %6, %8 : vector<32x128xf32>
    %cst_9 = arith.constant 0.000000e+00 : f32
    %10 = vector.broadcast %cst_9 : f32 to vector<32x128xf32>
    %11 = arith.maximumf %9, %10 : vector<32x128xf32>
    %c0_10 = arith.constant 0 : index
    %c0_11 = arith.constant 0 : index
    %12 = vector.load %arg6[%c0_10, %c0_11] : memref<1x32xf32, #tpu.memory_space<vmem>>, vector<1x32xf32>
    %cst_12 = arith.constant dense<0.000000e+00> : vector<1x128xf32>
    %13 = tpu.matmul %12, %11, %cst_12 {dimension_numbers = #tpu.dot_dimension_numbers<[1], [0], [0], [1], [0, 0, 1, 1], [], []>} : vector<1x32xf32>, vector<32x128xf32>, vector<1x128xf32> -> vector<1x128xf32>
    %c0_13 = arith.constant 0 : index
    %c0_14 = arith.constant 0 : index
    %14 = vector.load %arg7[%c0_13, %c0_14] : memref<1x1xf32, #tpu.memory_space<vmem>>, vector<1x1xf32>
    %15 = vector.broadcast %14 : vector<1x1xf32> to vector<1x128xf32>
    %16 = arith.addf %13, %15 : vector<1x128xf32>
    %17 = arith.negf %16 : vector<1x128xf32>
    %18 = math.exp %17 : vector<1x128xf32>
    %cst_15 = arith.constant 1.000000e+00 : f32
    %19 = vector.broadcast %cst_15 : f32 to vector<1x128xf32>
    %20 = arith.addf %19, %18 : vector<1x128xf32>
    %21 = arith.divf %19, %20 : vector<1x128xf32>
    %c0_16 = arith.constant 0 : index
    %c0_17 = arith.constant 0 : index
    %22 = vector.load %arg8[%c0_16, %c0_17] : memref<1x128xf32, #tpu.memory_space<vmem>>, vector<1x128xf32>
    tpu.vector_store %arg8[%c0_16, %c0_17], %21 {strides = array<i32>} : memref<1x128xf32, #tpu.memory_space<vmem>>, vector<1x128xf32>,
    return
  }
  func.func @transform_0(%arg0: i32) -> (i32, i32) {
    %c0_i32 = arith.constant 0 : i32
    %c0_i32_0 = arith.constant 0 : i32
    return %c0_i32, %arg0 : i32, i32
  }
  func.func @transform_1(%arg0: i32) -> (i32, i32) {
    %c0_i32 = arith.constant 0 : i32
    %c0_i32_0 = arith.constant 0 : i32
    %c0_i32_1 = arith.constant 0 : i32
    return %c0_i32, %c0_i32_0 : i32, i32
  }
  func.func @transform_2(%arg0: i32) -> (i32, i32) {
    %c0_i32 = arith.constant 0 : i32
    %c0_i32_0 = arith.constant 0 : i32
    %c0_i32_1 = arith.constant 0 : i32
    return %c0_i32, %c0_i32_0 : i32, i32
  }
  func.func @transform_3(%arg0: i32) -> (i32, i32) {
    %c0_i32 = arith.constant 0 : i32
    %c0_i32_0 = arith.constant 0 : i32
    %c0_i32_1 = arith.constant 0 : i32
    return %c0_i32, %c0_i32_0 : i32, i32
  }
  func.func @transform_4(%arg0: i32) -> (i32, i32) {
    %c0_i32 = arith.constant 0 : i32
    %c0_i32_0 = arith.constant 0 : i32
    %c0_i32_1 = arith.constant 0 : i32
    return %c0_i32, %c0_i32_0 : i32, i32
  }
  func.func @transform_5(%arg0: i32) -> (i32, i32) {
    %c0_i32 = arith.constant 0 : i32
    %c0_i32_0 = arith.constant 0 : i32
    %c0_i32_1 = arith.constant 0 : i32
    return %c0_i32, %c0_i32_0 : i32, i32
  }
  func.func @transform_6(%arg0: i32) -> (i32, i32) {
    %c0_i32 = arith.constant 0 : i32
    %c0_i32_0 = arith.constant 0 : i32
    %c0_i32_1 = arith.constant 0 : i32
    return %c0_i32, %c0_i32_0 : i32, i32
  }
  func.func @transform_7(%arg0: i32) -> (i32, i32) {
    %c0_i32 = arith.constant 0 : i32
    %c0_i32_0 = arith.constant 0 : i32
    return %c0_i32, %arg0 : i32, i32
  }
}

</mosaic_0001>

<llo_original>
// kernel: tpu_custom_call.1
$region0: #{tpu_custom_call.1}
  #allocation0 [shape = 'u32[]', space=smem, size = 0x4, offset = 0x4, fixed_abs, tag = 'smem constant byte address 0x4 - core index']
  #allocation1 [shape = 'u32[144,128]{1,0:T(1,128)}', space=vmem, size = 0x12000, scoped, tag = 'internal scratch']
  #allocation2 [shape = 'f32[1,1]{1,0:T(1,128)S(1)}', space=vmem, size = 0x200, scoped, tag = 'scoped memory for tpu_custom_call.1']
  %s0 = inlined_call_operand.hbm [shape: f32[512,256], index: 0, kind: input, shape index: {}]
  %s1 = inlined_call_operand.vmem [shape: f32[16,192], index: 1, kind: input, shape index: {}]
  %s2 = inlined_call_operand.vmem [shape: f32[16,1], index: 2, kind: input, shape index: {}]
  %s3 = inlined_call_operand.vmem [shape: f32[32,16], index: 3, kind: input, shape index: {}]
  %s4 = inlined_call_operand.vmem [shape: f32[32,1], index: 4, kind: input, shape index: {}]
  %s5 = inlined_call_operand.vmem [shape: f32[1,32], index: 5, kind: input, shape index: {}]
  %s6 = inlined_call_operand.<no memory space> [shape: f32[1,1], index: 6, kind: input, shape index: {}]
  %s7 = inlined_call_operand.hbm [shape: f32[1,256], index: 7, kind: output, shape index: {}]
  %s8 = sld [smem:[#allocation0]]
  $region72: #{tpu_custom_call.1} parent=0
    _
  %s10 = ssub.s32 1, %s8
  %s11 = scalar_select 0, %s10, %s8
  %v12 = vstv %s6
  %13 = vst [vmem:[#allocation2] sm:$0x1] %v12
  $region1: #{tpu_custom_call.1} parent=0
    #allocation3 [shape = 'u8[524288]{0}', space=vmem, size = 0x80000, scoped, tag = 'input window, operand 0']
    #allocation4 [shape = 's32[2]{0}', space=sflag, size = 0x8, scoped, tag = 'scoped memory for tpu_custom_call.1']
    #allocation5 [shape = 's32[2]{0}', space=sflag, size = 0x8, scoped, tag = 'scoped memory for tpu_custom_call.1']
    #allocation6 [shape = 'u8[1024]{0}', space=vmem, size = 0x400, scoped, tag = 'output window, operand 0']
    %14 = vsyncpa [#allocation4], 0
    %s15 = scalar_lea.sflag [#allocation4], 1
    %16 = vsyncpa %s15, 0
    %17 = vsyncpa [#allocation5], 0
    %s18 = scalar_lea.sflag [#allocation5], 1
    %19 = vsyncpa %s18, 0
    loop: start=0, step=1, limit=4
    $region2: #{tpu_custom_call.1} parent=1 // loop_pre_header
      _
    $region3: #{tpu_custom_call.1} parent=1 // loop_header
      %s21 = sphi 0, %s25
      %p22 = scmp.ge.s32.totalorder %s21, 4
      %s31 = sphi 0, %s33
      %s34 = sphi 0, %s31
      %s35 = sphi 0, %s34
      %s51 = sphi 0, %s35
      %s55 = sphi 0, %s55
      %s57 = sphi 0, %s55
      %s58 = sphi 0, %s57
      %s72 = sphi 0, %s58
      %s76 = sphi 0, %s76
      %s78 = sphi 0, %s76
      %s79 = sphi 0, %s78
      %s93 = sphi 0, %s79
      %s97 = sphi 0, %s97
      %s99 = sphi 0, %s97
      %s100 = sphi 0, %s99
      %s114 = sphi 0, %s100
      %s118 = sphi 0, %s118
      %s120 = sphi 0, %s118
      %s121 = sphi 0, %s120
      %s135 = sphi 0, %s121
      %s139 = sphi 0, %s139
      %s141 = sphi 0, %s139
      %s142 = sphi 0, %s141
      %s156 = sphi 0, %s142
      %s160 = sphi 0, %s160
      %s162 = sphi 0, %s160
      %s163 = sphi 0, %s162
      %s177 = sphi 0, %s163
      %s183 = sphi 0, %s185
      %s186 = sphi 0, %s183
      %s187 = sphi 0, %s186
      %s203 = sphi 0, %s187
    $region4: #{tpu_custom_call.1} parent=1 // loop_header_branch
      %24 = sbr.rel (%p22) target = $region8
    $region5: #{tpu_custom_call.1} parent=1 // loop_body
      %s26 = ssub.s32 %s21, 1
      %s27 = ssub.s32 %s21, 2
      %s28 = sadd.s32 %s21, 1
      %s29 = ssub.s32 %s21, %s28
      %p30 = scmp.eq.s32.totalorder %s29, 0
      %s32 = sadd.s32 %s31, 1
      %s33 = scalar_select %p30, %s31, %s32
      %p36 = pneg %p30
      %p37 = scmp.eq.s32.totalorder %s21, 1
      %p38 = por %p36, %p37
      %p39 = scmp.ne.s32.totalorder %s31, %s34
      %p40 = scmp.eq.s32.totalorder %s21, 0
      %p41 = por %p39, %p40
      %p42 = scmp.ne.s32.totalorder %s31, %s34
      %p43 = scmp.eq.s32.totalorder %s26, 1
      %p44 = por %p42, %p43
      %p45 = scmp.ne.s32.totalorder %s34, %s35
      %p46 = scmp.eq.s32.totalorder %s26, 0
      %p47 = por %p45, %p46
      %p48 = scmp.ne.s32.totalorder %s34, %s35
      %p49 = scmp.eq.s32.totalorder %s27, 1
      %p50 = por %p48, %p49
      %p52 = scmp.ne.s32.totalorder %s35, %s51
      %p53 = scmp.eq.s32.totalorder %s27, 0
      %p54 = por %p52, %p53
      %s56 = sadd.s32 %s55, 1
      %p59 = scmp.eq.s32.totalorder %s21, 1
      %p60 = scmp.ne.s32.totalorder %s55, %s57
      %p61 = scmp.eq.s32.totalorder %s21, 0
      %p62 = por %p60, %p61
      %p63 = scmp.ne.s32.totalorder %s55, %s57
      %p64 = scmp.eq.s32.totalorder %s26, 1
      %p65 = por %p63, %p64
      %p66 = scmp.ne.s32.totalorder %s57, %s58
      %p67 = scmp.eq.s32.totalorder %s26, 0
      %p68 = por %p66, %p67
      %p69 = scmp.ne.s32.totalorder %s57, %s58
      %p70 = scmp.eq.s32.totalorder %s27, 1
      %p71 = por %p69, %p70
      %p73 = scmp.ne.s32.totalorder %s58, %s72
      %p74 = scmp.eq.s32.totalorder %s27, 0
      %p75 = por %p73, %p74
      %s77 = sadd.s32 %s76, 1
      %p80 = scmp.eq.s32.totalorder %s21, 1
      %p81 = scmp.ne.s32.totalorder %s76, %s78
      %p82 = scmp.eq.s32.totalorder %s21, 0
      %p83 = por %p81, %p82
      %p84 = scmp.ne.s32.totalorder %s76, %s78
      %p85 = scmp.eq.s32.totalorder %s26, 1
      %p86 = por %p84, %p85
      %p87 = scmp.ne.s32.totalorder %s78, %s79
      %p88 = scmp.eq.s32.totalorder %s26, 0
      %p89 = por %p87, %p88
      %p90 = scmp.ne.s32.totalorder %s78, %s79
      %p91 = scmp.eq.s32.totalorder %s27, 1
      %p92 = por %p90, %p91
      %p94 = scmp.ne.s32.totalorder %s79, %s93
      %p95 = scmp.eq.s32.totalorder %s27, 0
      %p96 = por %p94, %p95
      %s98 = sadd.s32 %s97, 1
      %p101 = scmp.eq.s32.totalorder %s21, 1
      %p102 = scmp.ne.s32.totalorder %s97, %s99
      %p103 = scmp.eq.s32.totalorder %s21, 0
      %p104 = por %p102, %p103
      %p105 = scmp.ne.s32.totalorder %s97, %s99
      %p106 = scmp.eq.s32.totalorder %s26, 1
      %p107 = por %p105, %p106
      %p108 = scmp.ne.s32.totalorder %s99, %s100
      %p109 = scmp.eq.s32.totalorder %s26, 0
      %p110 = por %p108, %p109
      %p111 = scmp.ne.s32.totalorder %s99, %s100
      %p112 = scmp.eq.s32.totalorder %s27, 1
      %p113 = por %p111, %p112
      %p115 = scmp.ne.s32.totalorder %s100, %s114
      %p116 = scmp.eq.s32.totalorder %s27, 0
      %p117 = por %p115, %p116
      %s119 = sadd.s32 %s118, 1
      %p122 = scmp.eq.s32.totalorder %s21, 1
      %p123 = scmp.ne.s32.totalorder %s118, %s120
      %p124 = scmp.eq.s32.totalorder %s21, 0
      %p125 = por %p123, %p124
      %p126 = scmp.ne.s32.totalorder %s118, %s120
      %p127 = scmp.eq.s32.totalorder %s26, 1
      %p128 = por %p126, %p127
      %p129 = scmp.ne.s32.totalorder %s120, %s121
      %p130 = scmp.eq.s32.totalorder %s26, 0
      %p131 = por %p129, %p130
      %p132 = scmp.ne.s32.totalorder %s120, %s121
      %p133 = scmp.eq.s32.totalorder %s27, 1
      %p134 = por %p132, %p133
      %p136 = scmp.ne.s32.totalorder %s121, %s135
      %p137 = scmp.eq.s32.totalorder %s27, 0
      %p138 = por %p136, %p137
      %s140 = sadd.s32 %s139, 1
      %p143 = scmp.eq.s32.totalorder %s21, 1
      %p144 = scmp.ne.s32.totalorder %s139, %s141
      %p145 = scmp.eq.s32.totalorder %s21, 0
      %p146 = por %p144, %p145
      %p147 = scmp.ne.s32.totalorder %s139, %s141
      %p148 = scmp.eq.s32.totalorder %s26, 1
      %p149 = por %p147, %p148
      %p150 = scmp.ne.s32.totalorder %s141, %s142
      %p151 = scmp.eq.s32.totalorder %s26, 0
      %p152 = por %p150, %p151
      %p153 = scmp.ne.s32.totalorder %s141, %s142
      %p154 = scmp.eq.s32.totalorder %s27, 1
      %p155 = por %p153, %p154
      %p157 = scmp.ne.s32.totalorder %s142, %s156
      %p158 = scmp.eq.s32.totalorder %s27, 0
      %p159 = por %p157, %p158
      %s161 = sadd.s32 %s160, 1
      %p164 = scmp.eq.s32.totalorder %s21, 1
      %p165 = scmp.ne.s32.totalorder %s160, %s162
      %p166 = scmp.eq.s32.totalorder %s21, 0
      %p167 = por %p165, %p166
      %p168 = scmp.ne.s32.totalorder %s160, %s162
      %p169 = scmp.eq.s32.totalorder %s26, 1
      %p170 = por %p168, %p169
      %p171 = scmp.ne.s32.totalorder %s162, %s163
      %p172 = scmp.eq.s32.totalorder %s26, 0
      %p173 = por %p171, %p172
      %p174 = scmp.ne.s32.totalorder %s162, %s163
      %p175 = scmp.eq.s32.totalorder %s27, 1
      %p176 = por %p174, %p175
      %p178 = scmp.ne.s32.totalorder %s163, %s177
      %p179 = scmp.eq.s32.totalorder %s27, 0
      %p180 = por %p178, %p179
      %s181 = ssub.s32 %s21, %s28
      %p182 = scmp.eq.s32.totalorder %s181, 0
      %s184 = sadd.s32 %s183, 1
      %s185 = scalar_select %p182, %s183, %s184
      %p188 = pneg %p182
      %p189 = scmp.eq.s32.totalorder %s21, 1
      %p190 = por %p188, %p189
      %p191 = scmp.ne.s32.totalorder %s183, %s186
      %p192 = scmp.eq.s32.totalorder %s21, 0
      %p193 = por %p191, %p192
      %p194 = scmp.ne.s32.totalorder %s183, %s186
      %p195 = scmp.eq.s32.totalorder %s26, 1
      %p196 = por %p194, %p195
      %p197 = scmp.ne.s32.totalorder %s186, %s187
      %p198 = scmp.eq.s32.totalorder %s26, 0
      %p199 = por %p197, %p198
      %p200 = scmp.ne.s32.totalorder %s186, %s187
      %p201 = scmp.eq.s32.totalorder %s27, 1
      %p202 = por %p200, %p201
      %p204 = scmp.ne.s32.totalorder %s187, %s203
      %p205 = scmp.eq.s32.totalorder %s27, 0
      %p206 = por %p204, %p205
      %p207 = scmp.le.s32.totalorder 1, %s21
      %p208 = scmp.lt.s32.totalorder %s21, 3
      %p209 = pnand %p207, %p208
      %p210 = pneg %p209
      // Predicated region
      $region9: #{tpu_custom_call.1} parent=5 // pred_check
        _
      $region10: #{tpu_custom_call.1} parent=5 // pred_check_branch
        %212 = sbr.rel (%p209) target = $region12
      $region11: #{tpu_custom_call.1} parent=5 // pred_region
        %s213 = ssub.s32 %s21, 1
        // Predicated region
        $region13: #{tpu_custom_call.1} parent=11 // pred_check
          %p214 = pneg %p68
        $region14: #{tpu_custom_call.1} parent=11 // pred_check_branch
          %216 = sbr.rel (%p214) target = $region16
        $region15: #{tpu_custom_call.1} parent=11 // pred_region
          _
        $region16: #{tpu_custom_call.1} parent=11 // pred_fallthru
          _
        // Predicated region
        $region17: #{tpu_custom_call.1} parent=11 // pred_check
          %p217 = pneg %p89
        $region18: #{tpu_custom_call.1} parent=11 // pred_check_branch
          %219 = sbr.rel (%p217) target = $region20
        $region19: #{tpu_custom_call.1} parent=11 // pred_region
          _
        $region20: #{tpu_custom_call.1} parent=11 // pred_fallthru
          _
        // Predicated region
        $region21: #{tpu_custom_call.1} parent=11 // pred_check
          %p220 = pneg %p110
        $region22: #{tpu_custom_call.1} parent=11 // pred_check_branch
          %222 = sbr.rel (%p220) target = $region24
        $region23: #{tpu_custom_call.1} parent=11 // pred_region
          _
        $region24: #{tpu_custom_call.1} parent=11 // pred_fallthru
          _
        // Predicated region
        $region25: #{tpu_custom_call.1} parent=11 // pred_check
          %p223 = pneg %p131
        $region26: #{tpu_custom_call.1} parent=11 // pred_check_branch
          %225 = sbr.rel (%p223) target = $region28
        $region27: #{tpu_custom_call.1} parent=11 // pred_region
          _
        $region28: #{tpu_custom_call.1} parent=11 // pred_fallthru
          _
        // Predicated region
        $region29: #{tpu_custom_call.1} parent=11 // pred_check
          %p226 = pneg %p152
        $region30: #{tpu_custom_call.1} parent=11 // pred_check_branch
          %228 = sbr.rel (%p226) target = $region32
        $region31: #{tpu_custom_call.1} parent=11 // pred_region
          _
        $region32: #{tpu_custom_call.1} parent=11 // pred_fallthru
          _
        // Predicated region
        $region33: #{tpu_custom_call.1} parent=11 // pred_check
          %p229 = pneg %p173
        $region34: #{tpu_custom_call.1} parent=11 // pred_check_branch
          %231 = sbr.rel (%p229) target = $region36
        $region35: #{tpu_custom_call.1} parent=11 // pred_region
          _
        $region36: #{tpu_custom_call.1} parent=11 // pred_fallthru
          _
      $region12: #{tpu_custom_call.1} parent=5 // pred_fallthru
        _
      %p232 = scmp.lt.s32.totalorder %s21, 2
      // Predicated region
      $region37: #{tpu_custom_call.1} parent=5 // pred_check
        %p233 = pneg %p232
      $region38: #{tpu_custom_call.1} parent=5 // pred_check_branch
        %235 = sbr.rel (%p233) target = $region40
      $region39: #{tpu_custom_call.1} parent=5 // pred_region
        // Predicated region
        $region41: #{tpu_custom_call.1} parent=39 // pred_check
          %p236 = pneg %p41
        $region42: #{tpu_custom_call.1} parent=39 // pred_check_branch
          %238 = sbr.rel (%p236) target = $region44
        $region43: #{tpu_custom_call.1} parent=39 // pred_region
          %s239 = sand.u32 %s31, 1
          %s240 = scalar_lea.sflag [#allocation4], %s239
          %s241 = sand.u32 %s31, 1
          %s242 = smul.addr %s241, 512
          %s243 = scalar_lea.vmem [#allocation3], %s242
          %s245 = ssub.s32 8192, 8192
          %246 = vsyncadd %s240, %s245
          %s247 = smul.addr %s21, 128
          %s248 = scalar_lea.hbm %s0, %s247
          %s249 = sshll.u32 %s243, 4
          %s250 = int_to_ptr.vmem [resolvable:$true] %s249
          %255 = dma.hbm_to_vmem [thread:$0]  %s248, 8192, %s250, %s240, 256, 128, 8
        $region44: #{tpu_custom_call.1} parent=39 // pred_fallthru
          _
      $region40: #{tpu_custom_call.1} parent=5 // pred_fallthru
        _
      %p256 = scmp.le.s32.totalorder 1, %s21
      %p257 = scmp.lt.s32.totalorder %s21, 3
      %p258 = pnand %p256, %p257
      %p259 = pneg %p258
      // Predicated region
      $region45: #{tpu_custom_call.1} parent=5 // pred_check
        _
      $region46: #{tpu_custom_call.1} parent=5 // pred_check_branch
        %261 = sbr.rel (%p258) target = $region48
      $region47: #{tpu_custom_call.1} parent=5 // pred_region
        %s262 = ssub.s32 %s21, 1
        %s263 = sand.u32 %s34, 1
        %s264 = scalar_lea.sflag [#allocation4], %s263
        %s265 = sand.u32 %s34, 1
        %s266 = smul.addr %s265, 512
        %s267 = scalar_lea.vmem [#allocation3], %s266
        // Predicated region
        $region49: #{tpu_custom_call.1} parent=47 // pred_check
          %p268 = pneg %p47
        $region50: #{tpu_custom_call.1} parent=47 // pred_check_branch
          %270 = sbr.rel (%p268) target = $region52
        $region51: #{tpu_custom_call.1} parent=47 // pred_region
          %271 = dma.done %s264, 8192
        $region52: #{tpu_custom_call.1} parent=47 // pred_fallthru
          _
        %s272 = sand.u32 %s34, 1
        %s273 = scalar_lea.sflag [#allocation4], %s272
        %s274 = sand.u32 %s34, 1
        %s275 = smul.addr %s274, 512
        %s276 = scalar_lea.vmem [#allocation3], %s275
        %p277 = pneg %p47
        %p278 = pneg %p44
        %p279 = pneg %p68
        %p280 = pneg %p65
        %p281 = pneg %p89
        %p282 = pneg %p86
        %p283 = pneg %p110
        %p284 = pneg %p107
        %p285 = pneg %p131
        %p286 = pneg %p128
        %p287 = pneg %p152
        %p288 = pneg %p149
        %p289 = pneg %p173
        %p290 = pneg %p170
        %p291 = pneg %p199
        %p292 = pneg %p196
        %s293 = sand.u32 %s186, 1
        %s294 = scalar_lea.sflag [#allocation5], %s293
        %s295 = sand.u32 %s186, 1
        %s296 = scalar_lea.vmem [#allocation6], %s295
        %v297 = vld [vmem:[%s1] sm:$0xff]
        %v298 = vld [vmem:[%s1 + $0x8] sm:$0xff]
        %v299 = vld [vmem:[%s1 + $0x10] sm:$0xff]
        %v300 = vld [vmem:[%s1 + $0x18] sm:$0xff]
        %v301 = vld [vmem:[%s2] sm:$0xff]
        %v302 = vld [vmem:[%s2 + $0x8] sm:$0xff]
        loop: start=0, step=1, limit=41
        $region53: #{tpu_custom_call.1} parent=47 // loop_pre_header
          _
        $region54: #{tpu_custom_call.1} parent=47 // loop_header
          %s304 = sphi 0, %s308
          %p305 = scmp.ge.s32.totalorder %s304, 41
          %v309 = vphi 0.0, %v429
          %v310 = vphi 0.0, %v430
        $region55: #{tpu_custom_call.1} parent=47 // loop_header_branch
          %307 = sbr.rel (%p305) target = $region59
        $region56: #{tpu_custom_call.1} parent=47 // loop_body
          %s311 = smul.u32 %s304, 8
          %s312 = scalar_lea.vmem %s267, %s311 [#allocation3]
          %v313 = vld [vmem:[%s312] sm:$0xff]
          %v314 = vld [vmem:[%s312 + $0x8] sm:$0xff]
          %v315 = vld [vmem:[%s312 + $0x10] sm:$0xff]
          %v316 = vld [vmem:[%s312 + $0x18] sm:$0xff]
          %v317 = vld [vmem:[%s312 + $0x20] sm:$0xff]
          %v318 = vld [vmem:[%s312 + $0x28] sm:$0xff]
          %v319 = vld [vmem:[%s312 + $0x30] sm:$0xff]
          %v320 = vld [vmem:[%s312 + $0x38] sm:$0xff]
          %v321 = vld [vmem:[%s312 + $0x40] sm:$0xff]
          %v322 = vld [vmem:[%s312 + $0x48] sm:$0xff]
          %v323 = vld [vmem:[%s312 + $0x50] sm:$0xff]
          %v324 = vld [vmem:[%s312 + $0x58] sm:$0xff]
          %v325 = vld [vmem:[%s312 + $0x60] sm:$0xff]
          %v326 = vld [vmem:[%s312 + $0x68] sm:$0xff]
          %v327 = vld [vmem:[%s312 + $0x70] sm:$0xff]
          %v328 = vld [vmem:[%s312 + $0x78] sm:$0xff]
          %v329 = vld [vmem:[%s312 + $0x80] sm:$0xff]
          %v330 = vld [vmem:[%s312 + $0x88] sm:$0xff]
          %v331 = vld [vmem:[%s312 + $0x90] sm:$0xff]
          %v332 = vld [vmem:[%s312 + $0x98] sm:$0xff]
          %v333 = vld [vmem:[%s312 + $0xa0] sm:$0xff]
          %v334 = vld [vmem:[%s312 + $0xa8] sm:$0xff]
          %v335 = vld [vmem:[%s312 + $0xb0] sm:$0xff]
          %v336 = vld [vmem:[%s312 + $0xb8] sm:$0xff]
          %338 = vset.pattern.permute.xlu0 0
          %339 = vperm.xlu0 %338, %v301
          %v340 = vpop.permute.xlu0 %339
          %343 = vset.pattern.permute.xlu0 0
          %344 = vperm.xlu0 %343, %v302
          %v345 = vpop.permute.xlu0 %344
          %vm347 = vcmask 523264
          %v349 = vsel %vm347, %v298, 0
          %v352 = vsel %vm347, %v300, 0
          %354 = vmatprep.subr.mxu0 0.0
          %355 = vmatpush1.msra.mxu0 %v313
          %356 = vmatprep.subr.mxu0 0.0
          %357 = vmatpush1.msra.mxu0 %v314
          %358 = vmatprep.subr.mxu0 0.0
          %359 = vmatpush1.msra.mxu0 %v315
          %360 = vmatprep.subr.mxu0 0.0
          %361 = vmatpush1.msra.mxu0 %v316
          %362 = vmatprep.subr.mxu0 0.0
          %363 = vmatpush1.msra.mxu0 %v317
          %364 = vmatprep.subr.mxu0 0.0
          %365 = vmatpush1.msra.mxu0 %v318
          %366 = vmatprep.subr.mxu0 0.0
          %367 = vmatpush1.msra.mxu0 %v319
          %368 = vmatprep.subr.mxu0 0.0
          %369 = vmatpush1.msra.mxu0 %v320
          %370 = vmatprep.subr.mxu0 0.0
          %371 = vmatpush1.msra.mxu0 %v321
          %372 = vmatprep.subr.mxu0 0.0
          %373 = vmatpush1.msra.mxu0 %v322
          %374 = vmatprep.subr.mxu0 0.0
          %375 = vmatpush1.msra.mxu0 %v323
          %376 = vmatprep.subr.mxu0 0.0
          %377 = vmatpush1.msra.mxu0 %v324
          %378 = vmatprep.subr.mxu0 0.0
          %379 = vmatpush1.msra.mxu0 %v325
          %380 = vmatprep.subr.mxu0 0.0
          %381 = vmatpush1.msra.mxu0 %v326
          %382 = vmatprep.subr.mxu0 0.0
          %383 = vmatpush1.msra.mxu0 %v327
          %384 = vmatprep.subr.mxu0 0.0
          %385 = vmatpush1.msra.mxu0 %v328
          %386 = vmatprep.subr.mxu0 0.0
          %387 = vmatpush1.msra.mxu0 %v329
          %388 = vmatprep.subr.mxu0 0.0
          %389 = vmatpush1.msra.mxu0 %v330
          %390 = vmatprep.subr.mxu0 0.0
          %391 = vmatpush1.msra.mxu0 %v331
          %392 = vmatprep.subr.mxu0 0.0
          %393 = vmatpush1.msra.mxu0 %v332
          %394 = vmatprep.subr.mxu0 0.0
          %395 = vmatpush1.msra.mxu0 %v333
          %396 = vmatprep.subr.mxu0 0.0
          %397 = vmatpush1.msra.mxu0 %v334
          %398 = vmatprep.subr.mxu0 0.0
          %399 = vmatpush1.msra.mxu0 %v335
          %400 = vmatprep.subr.mxu0 0.0
          %401 = vmatpush1.msra.mxu0 %v336
          %402 = vmatprep.subr.mxu0 0.0
          %403 = vmatpush1.msra.mxu0 0.0
          %404 = vmatprep.subr.mxu0 0.0
          %405 = vmatpush1.msra.mxu0 0.0
          %406 = vmatprep.subr.mxu0 0.0
          %407 = vmatpush1.msra.mxu0 0.0
          %408 = vmatprep.subr.mxu0 0.0
          %409 = vmatpush1.msra.mxu0 0.0
          %410 = vmatprep.subr.mxu0 0.0
          %411 = vmatpush1.msra.mxu0 0.0
          %412 = vmatprep.subr.mxu0 0.0
          %413 = vmatpush1.msra.mxu0 0.0
          %414 = vmatprep.subr.mxu0 0.0
          %415 = vmatpush1.msra.mxu0 0.0
          %416 = vmatprep.subr.mxu0 0.0
          %417 = vmatpush1.msra.mxu0 0.0
          %418 = vmatprep.mubr.f32.mxu0 %v349
          %419 = vmatmul.mubr.f32.gmra.mrb[0].mxu0 %v297
          %v420 = vpop.f32.mrb[0].mxu0
          %v421 = vadd.f32 %v340, %v420
          %v422 = vpop.f32.mrb[0].mxu0
          %423 = vmatprep.mubr.f32.mxu0 %v352
          %424 = vmatmul.mubr.f32.gmra.mrb[0].mxu0 %v299
          %v425 = vpop.f32.mrb[0].mxu0
          %v426 = vadd.f32 %v345, %v425
          %v427 = vpop.f32.mrb[0].mxu0
          %428 = vdwg.mxu0
          %v429 = vmax.f32 %v309, %v421
          %v430 = vmax.f32 %v310, %v426
        $region57: #{tpu_custom_call.1} parent=47 // loop_footer
          %s308 = sadd.s32 1, %s304
        $region58: #{tpu_custom_call.1} parent=47 // loop_footer_branch
          %303 = sbr.rel target = $region54
        $region59: #{tpu_custom_call.1} parent=47 // loop_exit
          _
        %v431 = vld [vmem:[%s3] sm:$0xff]
        %v432 = vld [vmem:[%s3 + $0x8] sm:$0xff]
        %v433 = vld [vmem:[%s3 + $0x10] sm:$0xff]
        %v434 = vld [vmem:[%s3 + $0x18] sm:$0xff]
        %v435 = vld [vmem:[%s4] sm:$0xff]
        %v436 = vld [vmem:[%s4 + $0x8] sm:$0xff]
        %v437 = vld [vmem:[%s4 + $0x10] sm:$0xff]
        %v438 = vld [vmem:[%s4 + $0x18] sm:$0xff]
        %440 = vset.pattern.permute.xlu0 0
        %441 = vperm.xlu0 %440, %v435
        %v442 = vpop.permute.xlu0 %441
        %445 = vset.pattern.permute.xlu0 0
        %446 = vperm.xlu0 %445, %v436
        %v447 = vpop.permute.xlu0 %446
        %450 = vset.pattern.permute.xlu0 0
        %451 = vperm.xlu0 %450, %v437
        %v452 = vpop.permute.xlu0 %451
        %455 = vset.pattern.permute.xlu0 0
        %456 = vperm.xlu0 %455, %v438
        %v457 = vpop.permute.xlu0 %456
        %vm459 = vcmask 130048
        %v461 = vsel %vm459, %v431, 0
        %v464 = vsel %vm459, %v432, 0
        %v467 = vsel %vm459, %v433, 0
        %v470 = vsel %vm459, %v434, 0
        %472 = vmatprep.subr.mxu0 0.0
        %473 = vmatpush1.msra.mxu0 %v309
        %474 = vmatprep.subr.mxu0 0.0
        %475 = vmatpush1.msra.mxu0 %v310
        %476 = vmatprep.subr.mxu0 0.0
        %477 = vmatpush1.msra.mxu0 0.0
        %478 = vmatprep.subr.mxu0 0.0
        %479 = vmatpush1.msra.mxu0 0.0
        %480 = vmatprep.subr.mxu0 0.0
        %481 = vmatpush1.msra.mxu0 0.0
        %482 = vmatprep.subr.mxu0 0.0
        %483 = vmatpush1.msra.mxu0 0.0
        %484 = vmatprep.subr.mxu0 0.0
        %485 = vmatpush1.msra.mxu0 0.0
        %486 = vmatprep.subr.mxu0 0.0
        %487 = vmatpush1.msra.mxu0 0.0
        %488 = vmatprep.subr.mxu0 0.0
        %489 = vmatpush1.msra.mxu0 0.0
        %490 = vmatprep.subr.mxu0 0.0
        %491 = vmatpush1.msra.mxu0 0.0
        %492 = vmatprep.subr.mxu0 0.0
        %493 = vmatpush1.msra.mxu0 0.0
        %494 = vmatprep.subr.mxu0 0.0
        %495 = vmatpush1.msra.mxu0 0.0
        %496 = vmatprep.subr.mxu0 0.0
        %497 = vmatpush1.msra.mxu0 0.0
        %498 = vmatprep.subr.mxu0 0.0
        %499 = vmatpush1.msra.mxu0 0.0
        %500 = vmatprep.subr.mxu0 0.0
        %501 = vmatpush1.msra.mxu0 0.0
        %502 = vmatprep.subr.mxu0 0.0
        %503 = vmatpush1.msra.mxu0 0.0
        %504 = vmatprep.subr.mxu0 0.0
        %505 = vmatpush1.msra.mxu0 0.0
        %506 = vmatprep.subr.mxu0 0.0
        %507 = vmatpush1.msra.mxu0 0.0
        %508 = vmatprep.subr.mxu0 0.0
        %509 = vmatpush1.msra.mxu0 0.0
        %510 = vmatprep.subr.mxu0 0.0
        %511 = vmatpush1.msra.mxu0 0.0
        %512 = vmatprep.subr.mxu0 0.0
        %513 = vmatpush1.msra.mxu0 0.0
        %514 = vmatprep.subr.mxu0 0.0
        %515 = vmatpush1.msra.mxu0 0.0
        %516 = vmatprep.subr.mxu0 0.0
        %517 = vmatpush1.msra.mxu0 0.0
        %518 = vmatprep.subr.mxu0 0.0
        %519 = vmatpush1.msra.mxu0 0.0
        %520 = vmatprep.subr.mxu0 0.0
        %521 = vmatpush1.msra.mxu0 0.0
        %522 = vmatprep.subr.mxu0 0.0
        %523 = vmatpush1.msra.mxu0 0.0
        %524 = vmatprep.subr.mxu0 0.0
        %525 = vmatpush1.msra.mxu0 0.0
        %526 = vmatprep.subr.mxu0 0.0
        %527 = vmatpush1.msra.mxu0 0.0
        %528 = vmatprep.subr.mxu0 0.0
        %529 = vmatpush1.msra.mxu0 0.0
        %530 = vmatprep.subr.mxu0 0.0
        %531 = vmatpush1.msra.mxu0 0.0
        %532 = vmatprep.subr.mxu0 0.0
        %533 = vmatpush1.msra.mxu0 0.0
        %534 = vmatprep.subr.mxu0 0.0
        %535 = vmatpush1.msra.mxu0 0.0
        %536 = vmatprep.mubr.f32.mxu0 0.0
        %537 = vmatmul.mubr.f32.gmra.mrb[0].mxu0 %v461
        %v538 = vpop.f32.mrb[0].mxu0
        %v539 = vadd.f32 %v442, %v538
        %v540 = vpop.f32.mrb[0].mxu0
        %541 = vmatprep.mubr.f32.mxu0 0.0
        %542 = vmatmul.mubr.f32.gmra.mrb[0].mxu0 %v464
        %v543 = vpop.f32.mrb[0].mxu0
        %v544 = vadd.f32 %v447, %v543
        %v545 = vpop.f32.mrb[0].mxu0
        %546 = vmatprep.mubr.f32.mxu0 0.0
        %547 = vmatmul.mubr.f32.gmra.mrb[0].mxu0 %v467
        %v548 = vpop.f32.mrb[0].mxu0
        %v549 = vadd.f32 %v452, %v548
        %v550 = vpop.f32.mrb[0].mxu0
        %551 = vmatprep.mubr.f32.mxu0 0.0
        %552 = vmatmul.mubr.f32.gmra.mrb[0].mxu0 %v470
        %v553 = vpop.f32.mrb[0].mxu0
        %v554 = vadd.f32 %v457, %v553
        %v555 = vpop.f32.mrb[0].mxu0
        %556 = vdwg.mxu0
        %v557 = vmax.f32 %v539, 0.0
        %v558 = vmax.f32 %v544, 0.0
        %v559 = vmax.f32 %v549, 0.0
        %v560 = vmax.f32 %v554, 0.0
        %v561 = vld [vmem:[%s5] sm:$0x1]
        %v562 = vld [vmem:[#allocation2] sm:$0x1]
        %564 = vset.pattern.permute.xlu0 0
        %565 = vperm.xlu0 %564, %v562
        %v566 = vpop.permute.xlu0 %565
        %v568 = vlaneseq
        %v569 = vshrl.u32 %v568, 7
        %v570 = vsub.s32 0, %v569
        %v571 = vrot.slane %v566, %v570
        %vm572 = vcmask 261120
        %v574 = vsel %vm572, %v561, 0
        %576 = vmatprep.subr.mxu0 0.0
        %577 = vmatpush1.msra.mxu0 %v557
        %578 = vmatprep.subr.mxu0 0.0
        %579 = vmatpush1.msra.mxu0 %v558
        %580 = vmatprep.subr.mxu0 0.0
        %581 = vmatpush1.msra.mxu0 %v559
        %582 = vmatprep.subr.mxu0 0.0
        %583 = vmatpush1.msra.mxu0 %v560
        %584 = vmatprep.subr.mxu0 0.0
        %585 = vmatpush1.msra.mxu0 0.0
        %586 = vmatprep.subr.mxu0 0.0
        %587 = vmatpush1.msra.mxu0 0.0
        %588 = vmatprep.subr.mxu0 0.0
        %589 = vmatpush1.msra.mxu0 0.0
        %590 = vmatprep.subr.mxu0 0.0
        %591 = vmatpush1.msra.mxu0 0.0
        %592 = vmatprep.subr.mxu0 0.0
        %593 = vmatpush1.msra.mxu0 0.0
        %594 = vmatprep.subr.mxu0 0.0
        %595 = vmatpush1.msra.mxu0 0.0
        %596 = vmatprep.subr.mxu0 0.0
        %597 = vmatpush1.msra.mxu0 0.0
        %598 = vmatprep.subr.mxu0 0.0
        %599 = vmatpush1.msra.mxu0 0.0
        %600 = vmatprep.subr.mxu0 0.0
        %601 = vmatpush1.msra.mxu0 0.0
        %602 = vmatprep.subr.mxu0 0.0
        %603 = vmatpush1.msra.mxu0 0.0
        %604 = vmatprep.subr.mxu0 0.0
        %605 = vmatpush1.msra.mxu0 0.0
        %606 = vmatprep.subr.mxu0 0.0
        %607 = vmatpush1.msra.mxu0 0.0
        %608 = vmatprep.subr.mxu0 0.0
        %609 = vmatpush1.msra.mxu0 0.0
        %610 = vmatprep.subr.mxu0 0.0
        %611 = vmatpush1.msra.mxu0 0.0
        %612 = vmatprep.subr.mxu0 0.0
        %613 = vmatpush1.msra.mxu0 0.0
        %614 = vmatprep.subr.mxu0 0.0
        %615 = vmatpush1.msra.mxu0 0.0
        %616 = vmatprep.subr.mxu0 0.0
        %617 = vmatpush1.msra.mxu0 0.0
        %618 = vmatprep.subr.mxu0 0.0
        %619 = vmatpush1.msra.mxu0 0.0
        %620 = vmatprep.subr.mxu0 0.0
        %621 = vmatpush1.msra.mxu0 0.0
        %622 = vmatprep.subr.mxu0 0.0
        %623 = vmatpush1.msra.mxu0 0.0
        %624 = vmatprep.subr.mxu0 0.0
        %625 = vmatpush1.msra.mxu0 0.0
        %626 = vmatprep.subr.mxu0 0.0
        %627 = vmatpush1.msra.mxu0 0.0
        %628 = vmatprep.subr.mxu0 0.0
        %629 = vmatpush1.msra.mxu0 0.0
        %630 = vmatprep.subr.mxu0 0.0
        %631 = vmatpush1.msra.mxu0 0.0
        %632 = vmatprep.subr.mxu0 0.0
        %633 = vmatpush1.msra.mxu0 0.0
        %634 = vmatprep.subr.mxu0 0.0
        %635 = vmatpush1.msra.mxu0 0.0
        %636 = vmatprep.subr.mxu0 0.0
        %637 = vmatpush1.msra.mxu0 0.0
        %638 = vmatprep.subr.mxu0 0.0
        %639 = vmatpush1.msra.mxu0 0.0
        %640 = vmatprep.mubr.f32.mxu0 0.0
        %641 = vmatmul.mubr.f32.gmra.mrb[0].mxu0 %v574
        %v642 = vpop.f32.mrb[0].mxu0
        %v643 = vadd.f32 %v571, %v642
        %v644 = vpop.f32.mrb[0].mxu0
        %645 = vdwg.mxu0
        %v646 = vxor.u32 %v643, 2147483648
        %v647 = vmul.f32 %v646, 1.442695
        %v648 = vpow.pop %v647
        %v649 = vadd.f32 %v648, 1.0
        %v650 = vrcp.pop %v649
        %v651 = vmul.f32 1.0, %v650
        %652 = vst [vmem:[%s296] sm:$0x1] %v651
        %s653 = sand.u32 %s186, 1
        %s654 = scalar_lea.sflag [#allocation5], %s653
        %s655 = sand.u32 %s186, 1
        %s656 = scalar_lea.vmem [#allocation6], %s655
        // Predicated region
        $region60: #{tpu_custom_call.1} parent=47 // pred_check
          %p657 = pneg %p196
        $region61: #{tpu_custom_call.1} parent=47 // pred_check_branch
          %659 = sbr.rel (%p657) target = $region63
        $region62: #{tpu_custom_call.1} parent=47 // pred_region
          %s661 = ssub.s32 16, 16
          %662 = vsyncadd %s654, %s661
          %s663 = smul.addr %s26, 16
          %s664 = scalar_lea.hbm %s7, %s663
          %s666 = sshll.u32 %s656, 4
          %s667 = int_to_ptr.vmem [resolvable:$true] %s666
          %669 = dma.vmem_to_hbm [thread:$0]  %s667, 16, %s664, %s654
        $region63: #{tpu_custom_call.1} parent=47 // pred_fallthru
          _
      $region48: #{tpu_custom_call.1} parent=5 // pred_fallthru
        _
      %p670 = scmp.le.s32.totalorder 2, %s21
      // Predicated region
      $region64: #{tpu_custom_call.1} parent=5 // pred_check
        %p671 = pneg %p670
      $region65: #{tpu_custom_call.1} parent=5 // pred_check_branch
        %673 = sbr.rel (%p671) target = $region67
      $region66: #{tpu_custom_call.1} parent=5 // pred_region
        %s674 = ssub.s32 %s21, 2
        // Predicated region
        $region68: #{tpu_custom_call.1} parent=66 // pred_check
          %p675 = pneg %p202
        $region69: #{tpu_custom_call.1} parent=66 // pred_check_branch
          %677 = sbr.rel (%p675) target = $region71
        $region70: #{tpu_custom_call.1} parent=66 // pred_region
          %s678 = sand.u32 %s187, 1
          %s679 = scalar_lea.sflag [#allocation5], %s678
          %s680 = sand.u32 %s187, 1
          %s681 = scalar_lea.vmem [#allocation6], %s680
          %682 = dma.done %s679, 16
        $region71: #{tpu_custom_call.1} parent=66 // pred_fallthru
          _
      $region67: #{tpu_custom_call.1} parent=5 // pred_fallthru
        _
    $region6: #{tpu_custom_call.1} parent=1 // loop_footer
      %s25 = sadd.s32 1, %s21
    $region7: #{tpu_custom_call.1} parent=1 // loop_footer_branch
      %20 = sbr.rel target = $region3
    $region8: #{tpu_custom_call.1} parent=1 // loop_exit
      _
    %683 = vsyncpa [#allocation4], 1
    %s684 = scalar_lea.sflag [#allocation4], 1
    %685 = vsyncpa %s684, 1
    %686 = vsyncpa [#allocation5], 1
    %s687 = scalar_lea.sflag [#allocation5], 1
    %688 = vsyncpa %s687, 1

</llo_original>
